<compile_context>
chip_gen: v7x
topology: tpu7x:2x2x1
jax: 0.10.0
libtpu: 0.0.40
codegen_flags: <defaults>
</compile_context>

<pallas_src>
import functools

import jax
import jax.numpy as jnp
from jax.experimental import pallas as pl
from jax.experimental.pallas import tpu as pltpu


# ----------------------------------------------------------------------------
# Helpers
# ----------------------------------------------------------------------------
def _pick_heads_per_group(num_head, head_dim):
    """Smallest head multiple whose packed width is 128-lane aligned."""
    for m in range(1, num_head + 1):
        if num_head % m == 0 and (m * head_dim) % 128 == 0:
            return m
    return num_head            # fallback: one group holding all heads (gw == E)


def _vmem_limit_bytes(n, e, gw):
    """Generous per-step VMEM budget for the chosen block plan."""
    bf16, f32 = 2, 4
    blocks = 2 * n * e * bf16           # x block, double-buffered
    blocks += 2 * n * gw * bf16         # out block, double-buffered
    blocks += 2 * e * 3 * gw * bf16     # W group block, double-buffered
    blocks += 2 * 3 * gw * f32          # bias group block, double-buffered
    inter = n * 3 * gw * f32            # projected qkv slab (f32)
    inter += 2 * n * n * f32            # score matrix + exp (f32)
    inter += n * n * bf16               # softmax weights (bf16)
    inter += n * gw * f32               # per-group head outputs (f32 acc)
    total = 2 * (blocks + inter)        # 2x headroom for compiler scratch
    return int(min(max(total, 16 * 1024 * 1024), 56 * 1024 * 1024))


# ----------------------------------------------------------------------------
# Fused kernel: group QKV projection + per-head attention
#   one grid step == (one batch element, one head group)
# ----------------------------------------------------------------------------
def _mha_group_kernel(x_ref, w_ref, b_ref, o_ref, *, heads, head_dim):
    # x_ref : (1, N, E)   bf16  all tokens of one batch element
    # w_ref : (E, 3*gw)   bf16  [Wq_g^T | Wk_g^T | Wv_g^T] for this head group
    #                           (1/sqrt(num_head) already folded into Wq^T)
    # b_ref : (1, 3*gw)   f32   [bq_g | bk_g | bv_g] (scale folded into bq)
    # o_ref : (1, N, gw)  bf16  this group's output columns
    gw = heads * head_dim
    x = x_ref[0]                         # (N, E)     bf16
    w = w_ref[...]                       # (E, 3*gw)  bf16
    b = b_ref[...]                       # (1, 3*gw)  f32

    # One (N, E) x (E, 3*gw) MXU matmul for this group's Q|K|V, f32 acc + bias.
    qkv = jnp.dot(x, w, preferred_element_type=jnp.float32) + b   # (N, 3*gw) f32

    outs = []
    for h in range(heads):               # static unrolled loop over group heads
        lo = h * head_dim
        # Cast per-head slices only (no full bf16 copy of the slab kept live).
        q = qkv[:, lo:lo + head_dim].astype(jnp.bfloat16)                 # (N, hd)
        k = qkv[:, gw + lo:gw + lo + head_dim].astype(jnp.bfloat16)
        v = qkv[:, 2 * gw + lo:2 * gw + lo + head_dim].astype(jnp.bfloat16)

        # scores (n_q, n_k): contract head dims directly, no k.T copy.
        # The 1/sqrt(num_head) scale is already folded into the q projection.
        s = jax.lax.dot_general(q, k, (((1,), (1,)), ((), ())),
                                preferred_element_type=jnp.float32)

        # softmax over dim=2 of (b, h, n_q, n_k) == the QUERY axis == axis 0.
        s = s - jnp.max(s, axis=0, keepdims=True)
        e = jnp.exp(s)
        p = e * pl.reciprocal(jnp.sum(e, axis=0, keepdims=True), approx=True)

        # out_h = wei @ v : (n_q, n_k) @ (n_k, hd), bf16 operands, f32 acc.
        outs.append(jnp.dot(p.astype(jnp.bfloat16), v,
                            preferred_element_type=jnp.float32))

    # Single lane-dense (N, gw) store: heads packed back 'b h n e -> b n (h e)'.
    o_ref[0] = jnp.concatenate(outs, axis=-1).astype(o_ref.dtype)


# ----------------------------------------------------------------------------
# Wrapper
# ----------------------------------------------------------------------------
def multihead_forward(x, params, num_head, out_dtype=jnp.bfloat16):
    B, N, E = x.shape
    assert E % num_head == 0, "emb_size must be divisible by num_head"
    head_dim = E // num_head
    heads_per_group = _pick_heads_per_group(num_head, head_dim)
    num_groups = num_head // heads_per_group
    gw = heads_per_group * head_dim

    wq, bq = params["query"]
    wk, bk = params["key"]
    wv, bv = params["value"]

    # Host-side prep:
    #  * pre-transpose the nn.Linear weights (x @ W^T -> x @ Wt),
    #  * fold the 1/sqrt(num_head) score scale into Wq^T and bq,
    #  * pack columns head-group-major: group g owns [Wq_g | Wk_g | Wv_g].
    scale = 1.0 / (num_head ** 0.5)
    wq_t, wk_t, wv_t = wq.T * scale, wk.T, wv.T
    bq_s = bq * scale
    w_parts, b_parts = [], []
    for g in range(num_groups):
        cols = slice(g * gw, (g + 1) * gw)
        w_parts += [wq_t[:, cols], wk_t[:, cols], wv_t[:, cols]]
        b_parts += [bq_s[cols], bk[cols], bv[cols]]
    w_qkv = jnp.concatenate(w_parts, axis=1).astype(jnp.bfloat16)   # (E, 3E)
    b_qkv = jnp.concatenate(b_parts).reshape(1, 3 * E).astype(jnp.float32)
    x_bf = x.astype(jnp.bfloat16)

    kernel = functools.partial(_mha_group_kernel,
                               heads=heads_per_group, head_dim=head_dim)

    return pl.pallas_call(
        kernel,
        grid=(B, num_groups),
        in_specs=[
            # x: index constant along the group axis -> DMA'd once per batch.
            pl.BlockSpec((1, N, E), lambda b, g: (b, 0, 0)),
            # W / bias: only this group's 3*gw columns.
            pl.BlockSpec((E, 3 * gw), lambda b, g: (0, g)),
            pl.BlockSpec((1, 3 * gw), lambda b, g: (0, g)),
        ],
        out_specs=pl.BlockSpec((1, N, gw), lambda b, g: (b, 0, g)),
        out_shape=jax.ShapeDtypeStruct((B, N, E), out_dtype),
        compiler_params=pltpu.CompilerParams(
            dimension_semantics=("parallel", "parallel"),
            vmem_limit_bytes=_vmem_limit_bytes(N, E, gw)),
    )(x_bf, w_qkv, b_qkv)


# ----------------------------------------------------------------------------
# Pure-JAX f32 reference (mirrors the PyTorch forward exactly)
# ----------------------------------------------------------------------------
def multihead_reference(x, params, num_head):
    B, N, E = x.shape
    hd = E // num_head
    wq, bq = params["query"]
    wk, bk = params["key"]
    wv, bv = params["value"]
    q = x @ wq.T + bq
    k = x @ wk.T + bk
    v = x @ wv.T + bv
    sh = lambda t: t.reshape(B, N, num_head, hd).transpose(0, 2, 1, 3)
    q, k, v = sh(q), sh(k), sh(v)
    wei = jnp.einsum("bhqe,bhke->bhqk", q, k) / (num_head ** 0.5)
    wei = jax.nn.softmax(wei, axis=2)   # softmax over query axis (dim=2)
    out = jnp.einsum("bhqk,bhke->bhqe", wei, v)
    return out.transpose(0, 2, 1, 3).reshape(B, N, E)


def init_params(key, emb_size):
    # Deterministic init mimicking PyTorch nn.Linear default (uniform +-1/sqrt(E))
    bound = 1.0 / (emb_size ** 0.5)
    keys = jax.random.split(key, 6)

    def lin(kw, kb):
        w = jax.random.uniform(kw, (emb_size, emb_size), jnp.float32, -bound, bound)
        b = jax.random.uniform(kb, (emb_size,), jnp.float32, -bound, bound)
        return w, b

    return {
        "key": lin(keys[0], keys[1]),
        "value": lin(keys[2], keys[3]),
        "query": lin(keys[4], keys[5]),
    }


if __name__ == "__main__":
    B, N, E, H = 2, 8, 32, 4   # batch, seq, emb_size, num_head
    key = jax.random.PRNGKey(0)
    kx, kp = jax.random.split(key)
    x = jax.random.normal(kx, (B, N, E), dtype=jnp.float32)
    params = init_params(kp, E)

    out = multihead_forward(x, params, H)
    out = jax.block_until_ready(out)

    ref = multihead_reference(x, params, H)
    assert out.shape == (B, N, E)
    # bf16 MXU operands + bf16 output vs f32 reference -> relaxed tolerance
    assert jnp.allclose(out.astype(jnp.float32), ref, atol=5e-2, rtol=5e-2), \
        "mismatch vs reference"
    print("KERNEL_OK")
</pallas_src>

<mosaic_0001>
module attributes {stable_mosaic.version = 11 : i64} {
  func.func @_mha_group_kernel(%arg0: i32, %arg1: i32, %arg2: memref<1x8x32xbf16, #tpu.memory_space<vmem>>, %arg3: memref<32x96xbf16, #tpu.memory_space<vmem>>, %arg4: memref<1x96xf32, #tpu.memory_space<vmem>>, %arg5: memref<1x8x32xbf16, #tpu.memory_space<vmem>>) attributes {dimension_semantics = [#tpu.dimension_semantics<parallel>, #tpu.dimension_semantics<parallel>], iteration_bounds = array<i64: 2, 1>, scalar_prefetch = 0 : i64, scratch_operands = 0 : i64, tpu.core_type = #tpu.core_type<tc>, window_params = [{transform_indices = @transform_0, window_bounds = array<i64: 1, 8, 32>}, {transform_indices = @transform_1, window_bounds = array<i64: 32, 96>}, {transform_indices = @transform_2, window_bounds = array<i64: 1, 96>}, {transform_indices = @transform_3, window_bounds = array<i64: 1, 8, 32>}]} {
    %c0 = arith.constant 0 : index
    %c0_0 = arith.constant 0 : index
    %c0_1 = arith.constant 0 : index
    %0 = vector.load %arg2[%c0, %c0_0, %c0_1] : memref<1x8x32xbf16, #tpu.memory_space<vmem>>, vector<1x8x32xbf16>
    %1 = vector.shape_cast %0 : vector<1x8x32xbf16> to vector<8x32xbf16>
    %c0_2 = arith.constant 0 : index
    %c0_3 = arith.constant 0 : index
    %2 = vector.load %arg3[%c0_2, %c0_3] : memref<32x96xbf16, #tpu.memory_space<vmem>>, vector<32x96xbf16>
    %c0_4 = arith.constant 0 : index
    %c0_5 = arith.constant 0 : index
    %3 = vector.load %arg4[%c0_4, %c0_5] : memref<1x96xf32, #tpu.memory_space<vmem>>, vector<1x96xf32>
    %cst = arith.constant dense<0.000000e+00> : vector<8x96xf32>
    %4 = tpu.matmul %1, %2, %cst {dimension_numbers = #tpu.dot_dimension_numbers<[1], [0], [0], [1], [0, 0, 1, 1], [], []>} : vector<8x32xbf16>, vector<32x96xbf16>, vector<8x96xf32> -> vector<8x96xf32>
    %5 = vector.broadcast %3 : vector<1x96xf32> to vector<8x96xf32>
    %6 = arith.addf %4, %5 : vector<8x96xf32>
    %7 = vector.extract_strided_slice %6 {offsets = [0, 0], sizes = [8, 8], strides = [1, 1]} : vector<8x96xf32> to vector<8x8xf32>
    %8 = arith.truncf %7 : vector<8x8xf32> to vector<8x8xbf16>
    %9 = vector.extract_strided_slice %6 {offsets = [0, 32], sizes = [8, 8], strides = [1, 1]} : vector<8x96xf32> to vector<8x8xf32>
    %10 = arith.truncf %9 : vector<8x8xf32> to vector<8x8xbf16>
    %11 = vector.extract_strided_slice %6 {offsets = [0, 64], sizes = [8, 8], strides = [1, 1]} : vector<8x96xf32> to vector<8x8xf32>
    %12 = arith.truncf %11 : vector<8x8xf32> to vector<8x8xbf16>
    %cst_6 = arith.constant dense<0.000000e+00> : vector<8x8xf32>
    %13 = tpu.matmul %8, %10, %cst_6 {dimension_numbers = #tpu.dot_dimension_numbers<[1], [1], [0], [0], [0, 0, 1, 0], [], []>} : vector<8x8xbf16>, vector<8x8xbf16>, vector<8x8xf32> -> vector<8x8xf32>
    %cst_7 = arith.constant dense<0xFF800000> : vector<8xf32>
    %14 = vector.multi_reduction <maximumf>, %13, %cst_7 [0] : vector<8x8xf32> to vector<8xf32>
    %15 = vector.shape_cast %14 : vector<8xf32> to vector<1x8xf32>
    %16 = vector.broadcast %15 : vector<1x8xf32> to vector<8x8xf32>
    %17 = arith.subf %13, %16 : vector<8x8xf32>
    %18 = math.exp %17 : vector<8x8xf32>
    %cst_8 = arith.constant dense<0.000000e+00> : vector<8xf32>
    %19 = vector.multi_reduction <add>, %18, %cst_8 [0] : vector<8x8xf32> to vector<8xf32>
    %20 = vector.shape_cast %19 : vector<8xf32> to vector<1x8xf32>
    %21 = tpu.reciprocal %20 {approx = true} : vector<1x8xf32> -> vector<1x8xf32>
    %22 = vector.broadcast %21 : vector<1x8xf32> to vector<8x8xf32>
    %23 = arith.mulf %18, %22 : vector<8x8xf32>
    %24 = arith.truncf %23 : vector<8x8xf32> to vector<8x8xbf16>
    %cst_9 = arith.constant dense<0.000000e+00> : vector<8x8xf32>
    %25 = tpu.matmul %24, %12, %cst_9 {dimension_numbers = #tpu.dot_dimension_numbers<[1], [0], [0], [1], [0, 0, 1, 1], [], []>} : vector<8x8xbf16>, vector<8x8xbf16>, vector<8x8xf32> -> vector<8x8xf32>
    %26 = vector.extract_strided_slice %6 {offsets = [0, 8], sizes = [8, 8], strides = [1, 1]} : vector<8x96xf32> to vector<8x8xf32>
    %27 = arith.truncf %26 : vector<8x8xf32> to vector<8x8xbf16>
    %28 = vector.extract_strided_slice %6 {offsets = [0, 40], sizes = [8, 8], strides = [1, 1]} : vector<8x96xf32> to vector<8x8xf32>
    %29 = arith.truncf %28 : vector<8x8xf32> to vector<8x8xbf16>
    %30 = vector.extract_strided_slice %6 {offsets = [0, 72], sizes = [8, 8], strides = [1, 1]} : vector<8x96xf32> to vector<8x8xf32>
    %31 = arith.truncf %30 : vector<8x8xf32> to vector<8x8xbf16>
    %cst_10 = arith.constant dense<0.000000e+00> : vector<8x8xf32>
    %32 = tpu.matmul %27, %29, %cst_10 {dimension_numbers = #tpu.dot_dimension_numbers<[1], [1], [0], [0], [0, 0, 1, 0], [], []>} : vector<8x8xbf16>, vector<8x8xbf16>, vector<8x8xf32> -> vector<8x8xf32>
    %cst_11 = arith.constant dense<0xFF800000> : vector<8xf32>
    %33 = vector.multi_reduction <maximumf>, %32, %cst_11 [0] : vector<8x8xf32> to vector<8xf32>
    %34 = vector.shape_cast %33 : vector<8xf32> to vector<1x8xf32>
    %35 = vector.broadcast %34 : vector<1x8xf32> to vector<8x8xf32>
    %36 = arith.subf %32, %35 : vector<8x8xf32>
    %37 = math.exp %36 : vector<8x8xf32>
    %cst_12 = arith.constant dense<0.000000e+00> : vector<8xf32>
    %38 = vector.multi_reduction <add>, %37, %cst_12 [0] : vector<8x8xf32> to vector<8xf32>
    %39 = vector.shape_cast %38 : vector<8xf32> to vector<1x8xf32>
    %40 = tpu.reciprocal %39 {approx = true} : vector<1x8xf32> -> vector<1x8xf32>
    %41 = vector.broadcast %40 : vector<1x8xf32> to vector<8x8xf32>
    %42 = arith.mulf %37, %41 : vector<8x8xf32>
    %43 = arith.truncf %42 : vector<8x8xf32> to vector<8x8xbf16>
    %cst_13 = arith.constant dense<0.000000e+00> : vector<8x8xf32>
    %44 = tpu.matmul %43, %31, %cst_13 {dimension_numbers = #tpu.dot_dimension_numbers<[1], [0], [0], [1], [0, 0, 1, 1], [], []>} : vector<8x8xbf16>, vector<8x8xbf16>, vector<8x8xf32> -> vector<8x8xf32>
    %45 = vector.extract_strided_slice %6 {offsets = [0, 16], sizes = [8, 8], strides = [1, 1]} : vector<8x96xf32> to vector<8x8xf32>
    %46 = arith.truncf %45 : vector<8x8xf32> to vector<8x8xbf16>
    %47 = vector.extract_strided_slice %6 {offsets = [0, 48], sizes = [8, 8], strides = [1, 1]} : vector<8x96xf32> to vector<8x8xf32>
    %48 = arith.truncf %47 : vector<8x8xf32> to vector<8x8xbf16>
    %49 = vector.extract_strided_slice %6 {offsets = [0, 80], sizes = [8, 8], strides = [1, 1]} : vector<8x96xf32> to vector<8x8xf32>
    %50 = arith.truncf %49 : vector<8x8xf32> to vector<8x8xbf16>
    %cst_14 = arith.constant dense<0.000000e+00> : vector<8x8xf32>
    %51 = tpu.matmul %46, %48, %cst_14 {dimension_numbers = #tpu.dot_dimension_numbers<[1], [1], [0], [0], [0, 0, 1, 0], [], []>} : vector<8x8xbf16>, vector<8x8xbf16>, vector<8x8xf32> -> vector<8x8xf32>
    %cst_15 = arith.constant dense<0xFF800000> : vector<8xf32>
    %52 = vector.multi_reduction <maximumf>, %51, %cst_15 [0] : vector<8x8xf32> to vector<8xf32>
    %53 = vector.shape_cast %52 : vector<8xf32> to vector<1x8xf32>
    %54 = vector.broadcast %53 : vector<1x8xf32> to vector<8x8xf32>
    %55 = arith.subf %51, %54 : vector<8x8xf32>
    %56 = math.exp %55 : vector<8x8xf32>
    %cst_16 = arith.constant dense<0.000000e+00> : vector<8xf32>
    %57 = vector.multi_reduction <add>, %56, %cst_16 [0] : vector<8x8xf32> to vector<8xf32>
    %58 = vector.shape_cast %57 : vector<8xf32> to vector<1x8xf32>
    %59 = tpu.reciprocal %58 {approx = true} : vector<1x8xf32> -> vector<1x8xf32>
    %60 = vector.broadcast %59 : vector<1x8xf32> to vector<8x8xf32>
    %61 = arith.mulf %56, %60 : vector<8x8xf32>
    %62 = arith.truncf %61 : vector<8x8xf32> to vector<8x8xbf16>
    %cst_17 = arith.constant dense<0.000000e+00> : vector<8x8xf32>
    %63 = tpu.matmul %62, %50, %cst_17 {dimension_numbers = #tpu.dot_dimension_numbers<[1], [0], [0], [1], [0, 0, 1, 1], [], []>} : vector<8x8xbf16>, vector<8x8xbf16>, vector<8x8xf32> -> vector<8x8xf32>
    %64 = vector.extract_strided_slice %6 {offsets = [0, 24], sizes = [8, 8], strides = [1, 1]} : vector<8x96xf32> to vector<8x8xf32>
    %65 = arith.truncf %64 : vector<8x8xf32> to vector<8x8xbf16>
    %66 = vector.extract_strided_slice %6 {offsets = [0, 56], sizes = [8, 8], strides = [1, 1]} : vector<8x96xf32> to vector<8x8xf32>
    %67 = arith.truncf %66 : vector<8x8xf32> to vector<8x8xbf16>
    %68 = vector.extract_strided_slice %6 {offsets = [0, 88], sizes = [8, 8], strides = [1, 1]} : vector<8x96xf32> to vector<8x8xf32>
    %69 = arith.truncf %68 : vector<8x8xf32> to vector<8x8xbf16>
    %cst_18 = arith.constant dense<0.000000e+00> : vector<8x8xf32>
    %70 = tpu.matmul %65, %67, %cst_18 {dimension_numbers = #tpu.dot_dimension_numbers<[1], [1], [0], [0], [0, 0, 1, 0], [], []>} : vector<8x8xbf16>, vector<8x8xbf16>, vector<8x8xf32> -> vector<8x8xf32>
    %cst_19 = arith.constant dense<0xFF800000> : vector<8xf32>
    %71 = vector.multi_reduction <maximumf>, %70, %cst_19 [0] : vector<8x8xf32> to vector<8xf32>
    %72 = vector.shape_cast %71 : vector<8xf32> to vector<1x8xf32>
    %73 = vector.broadcast %72 : vector<1x8xf32> to vector<8x8xf32>
    %74 = arith.subf %70, %73 : vector<8x8xf32>
    %75 = math.exp %74 : vector<8x8xf32>
    %cst_20 = arith.constant dense<0.000000e+00> : vector<8xf32>
    %76 = vector.multi_reduction <add>, %75, %cst_20 [0] : vector<8x8xf32> to vector<8xf32>
    %77 = vector.shape_cast %76 : vector<8xf32> to vector<1x8xf32>
    %78 = tpu.reciprocal %77 {approx = true} : vector<1x8xf32> -> vector<1x8xf32>
    %79 = vector.broadcast %78 : vector<1x8xf32> to vector<8x8xf32>
    %80 = arith.mulf %75, %79 : vector<8x8xf32>
    %81 = arith.truncf %80 : vector<8x8xf32> to vector<8x8xbf16>
    %cst_21 = arith.constant dense<0.000000e+00> : vector<8x8xf32>
    %82 = tpu.matmul %81, %69, %cst_21 {dimension_numbers = #tpu.dot_dimension_numbers<[1], [0], [0], [1], [0, 0, 1, 1], [], []>} : vector<8x8xbf16>, vector<8x8xbf16>, vector<8x8xf32> -> vector<8x8xf32>
    %83 = tpu.concatenate %25, %44, %63, %82 in 1 : vector<8x8xf32>, vector<8x8xf32>, vector<8x8xf32>, vector<8x8xf32> -> vector<8x32xf32>
    %84 = arith.truncf %83 : vector<8x32xf32> to vector<8x32xbf16>
    %c0_22 = arith.constant 0 : index
    %c0_23 = arith.constant 0 : index
    %c0_24 = arith.constant 0 : index
    %85 = vector.load %arg5[%c0_22, %c0_23, %c0_24] : memref<1x8x32xbf16, #tpu.memory_space<vmem>>, vector<1x8x32xbf16>
    %86 = vector.shape_cast %85 : vector<1x8x32xbf16> to vector<8x32xbf16>
    %87 = vector.shape_cast %84 : vector<8x32xbf16> to vector<1x8x32xbf16>
    tpu.vector_store %arg5[%c0_22, %c0_23, %c0_24], %87 {strides = array<i32>} : memref<1x8x32xbf16, #tpu.memory_space<vmem>>, vector<1x8x32xbf16>,
    return
  }
  func.func @transform_0(%arg0: i32, %arg1: i32) -> (i32, i32, i32) {
    %c0_i32 = arith.constant 0 : i32
    %c0_i32_0 = arith.constant 0 : i32
    %c0_i32_1 = arith.constant 0 : i32
    return %arg0, %c0_i32, %c0_i32_0 : i32, i32, i32
  }
  func.func @transform_1(%arg0: i32, %arg1: i32) -> (i32, i32) {
    %c0_i32 = arith.constant 0 : i32
    %c0_i32_0 = arith.constant 0 : i32
    return %c0_i32, %arg1 : i32, i32
  }
  func.func @transform_2(%arg0: i32, %arg1: i32) -> (i32, i32) {
    %c0_i32 = arith.constant 0 : i32
    %c0_i32_0 = arith.constant 0 : i32
    return %c0_i32, %arg1 : i32, i32
  }
  func.func @transform_3(%arg0: i32, %arg1: i32) -> (i32, i32, i32) {
    %c0_i32 = arith.constant 0 : i32
    %c0_i32_0 = arith.constant 0 : i32
    return %arg0, %c0_i32, %arg1 : i32, i32, i32
  }
}

</mosaic_0001>

<llo_original>
// kernel: tpu_custom_call.1
$region0: #{tpu_custom_call.1}
  #allocation0 [shape = 'u32[]', space=smem, size = 0x4, offset = 0x4, fixed_abs, tag = 'smem constant byte address 0x4 - core index']
  #allocation1 [shape = 'u32[144,128]{1,0:T(1,128)}', space=vmem, size = 0x12000, scoped, tag = 'internal scratch']
  %s0 = inlined_call_operand.hbm [shape: bf16[2,8,32], index: 0, kind: input, shape index: {}]
  %s1 = inlined_call_operand.hbm [shape: bf16[32,96], index: 1, kind: input, shape index: {}]
  %s2 = inlined_call_operand.vmem [shape: f32[1,96], index: 2, kind: input, shape index: {}]
  %s3 = inlined_call_operand.hbm [shape: bf16[2,8,32], index: 3, kind: output, shape index: {}]
  %s4 = sld [smem:[#allocation0]]
  $region53: #{tpu_custom_call.1} parent=0
    _
  %s6 = ssub.s32 1, %s4
  %s7 = scalar_select 0, %s6, %s4
  $region1: #{tpu_custom_call.1} parent=0
    #allocation2 [shape = 'u8[4096]{0}', space=vmem, size = 0x1000, scoped, tag = 'input window, operand 0']
    #allocation3 [shape = 's32[2]{0}', space=sflag, size = 0x8, scoped, tag = 'scoped memory for tpu_custom_call.1']
    #allocation4 [shape = 's32[2]{0}', space=sflag, size = 0x8, scoped, tag = 'scoped memory for tpu_custom_call.1']
    #allocation5 [shape = 'u8[8192]{0}', space=vmem, size = 0x2000, scoped, tag = 'input window, operand 1, single buffered']
    #allocation6 [shape = 's32[1]{0}', space=sflag, size = 0x4, scoped, tag = 'scoped memory for tpu_custom_call.1']
    #allocation7 [shape = 'u8[4096]{0}', space=vmem, size = 0x1000, scoped, tag = 'output window, operand 0']
    %8 = vsyncpa [#allocation3], 0
    %s9 = scalar_lea.sflag [#allocation3], 1
    %10 = vsyncpa %s9, 0
    %11 = vsyncpa [#allocation6], 0
    %12 = vsyncpa [#allocation4], 0
    %s13 = scalar_lea.sflag [#allocation4], 1
    %14 = vsyncpa %s13, 0
    loop: start=0, step=1, limit=4
    $region2: #{tpu_custom_call.1} parent=1 // loop_pre_header
      _
    $region3: #{tpu_custom_call.1} parent=1 // loop_header
      %s16 = sphi 0, %s20
      %p17 = scmp.ge.s32.totalorder %s16, 4
      %s23 = sphi 0, %s35
      %s24 = sphi 0, %s31
      %s25 = sphi 0, %s23
      %s26 = sphi 0, %s24
      %s27 = sphi 0, %s25
      %s28 = sphi 0, %s26
      %s38 = sphi 0, %s40
      %s41 = sphi 0, %s38
      %s42 = sphi 0, %s41
      %s58 = sphi 0, %s42
      %s64 = sphi 0, %s66
      %s67 = sphi 0, %s64
      %s68 = sphi 0, %s67
      %s84 = sphi 0, %s68
      %s90 = sphi 0, %s92
      %s93 = sphi 0, %s90
      %s94 = sphi 0, %s93
      %s110 = sphi 0, %s94
      %s118 = sphi 0, %s120
      %s121 = sphi 0, %s118
      %s122 = sphi 0, %s121
      %s138 = sphi 0, %s122
    $region4: #{tpu_custom_call.1} parent=1 // loop_header_branch
      %19 = sbr.rel (%p17) target = $region8
    $region5: #{tpu_custom_call.1} parent=1 // loop_body
      %s21 = ssub.s32 %s16, 1
      %s22 = ssub.s32 %s16, 2
      %s29 = sadd.s32 1, %s24
      %p30 = scmp.ge.s32.totalorder %s29, 1
      %s31 = scalar_select %p30, 0, %s29
      %s32 = sadd.s32 1, %s23
      %s33 = scalar_select %p30, %s32, %s23
      %p34 = scmp.ge.s32.totalorder %s33, 2
      %s35 = scalar_select %p34, 0, %s33
      %s36 = ssub.s32 %s23, %s35
      %p37 = scmp.eq.s32.totalorder %s36, 0
      %s39 = sadd.s32 %s38, 1
      %s40 = scalar_select %p37, %s38, %s39
      %p43 = pneg %p37
      %p44 = scmp.eq.s32.totalorder %s16, 1
      %p45 = por %p43, %p44
      %p46 = scmp.ne.s32.totalorder %s38, %s41
      %p47 = scmp.eq.s32.totalorder %s16, 0
      %p48 = por %p46, %p47
      %p49 = scmp.ne.s32.totalorder %s38, %s41
      %p50 = scmp.eq.s32.totalorder %s21, 1
      %p51 = por %p49, %p50
      %p52 = scmp.ne.s32.totalorder %s41, %s42
      %p53 = scmp.eq.s32.totalorder %s21, 0
      %p54 = por %p52, %p53
      %p55 = scmp.ne.s32.totalorder %s41, %s42
      %p56 = scmp.eq.s32.totalorder %s22, 1
      %p57 = por %p55, %p56
      %p59 = scmp.ne.s32.totalorder %s42, %s58
      %p60 = scmp.eq.s32.totalorder %s22, 0
      %p61 = por %p59, %p60
      %s62 = ssub.s32 %s24, %s31
      %p63 = scmp.eq.s32.totalorder %s62, 0
      %s65 = sadd.s32 %s64, 1
      %s66 = scalar_select %p63, %s64, %s65
      %p69 = pneg %p63
      %p70 = scmp.eq.s32.totalorder %s16, 1
      %p71 = por %p69, %p70
      %p72 = scmp.ne.s32.totalorder %s64, %s67
      %p73 = scmp.eq.s32.totalorder %s16, 0
      %p74 = por %p72, %p73
      %p75 = scmp.ne.s32.totalorder %s64, %s67
      %p76 = scmp.eq.s32.totalorder %s21, 1
      %p77 = por %p75, %p76
      %p78 = scmp.ne.s32.totalorder %s67, %s68
      %p79 = scmp.eq.s32.totalorder %s21, 0
      %p80 = por %p78, %p79
      %p81 = scmp.ne.s32.totalorder %s67, %s68
      %p82 = scmp.eq.s32.totalorder %s22, 1
      %p83 = por %p81, %p82
      %p85 = scmp.ne.s32.totalorder %s68, %s84
      %p86 = scmp.eq.s32.totalorder %s22, 0
      %p87 = por %p85, %p86
      %s88 = ssub.s32 %s24, %s31
      %p89 = scmp.eq.s32.totalorder %s88, 0
      %s91 = sadd.s32 %s90, 1
      %s92 = scalar_select %p89, %s90, %s91
      %p95 = pneg %p89
      %p96 = scmp.eq.s32.totalorder %s16, 1
      %p97 = por %p95, %p96
      %p98 = scmp.ne.s32.totalorder %s90, %s93
      %p99 = scmp.eq.s32.totalorder %s16, 0
      %p100 = por %p98, %p99
      %p101 = scmp.ne.s32.totalorder %s90, %s93
      %p102 = scmp.eq.s32.totalorder %s21, 1
      %p103 = por %p101, %p102
      %p104 = scmp.ne.s32.totalorder %s93, %s94
      %p105 = scmp.eq.s32.totalorder %s21, 0
      %p106 = por %p104, %p105
      %p107 = scmp.ne.s32.totalorder %s93, %s94
      %p108 = scmp.eq.s32.totalorder %s22, 1
      %p109 = por %p107, %p108
      %p111 = scmp.ne.s32.totalorder %s94, %s110
      %p112 = scmp.eq.s32.totalorder %s22, 0
      %p113 = por %p111, %p112
      %s114 = ssub.s32 %s23, %s35
      %s115 = ssub.s32 %s24, %s31
      %s116 = sor.u32 %s114, %s115
      %p117 = scmp.eq.s32.totalorder %s116, 0
      %s119 = sadd.s32 %s118, 1
      %s120 = scalar_select %p117, %s118, %s119
      %p123 = pneg %p117
      %p124 = scmp.eq.s32.totalorder %s16, 1
      %p125 = por %p123, %p124
      %p126 = scmp.ne.s32.totalorder %s118, %s121
      %p127 = scmp.eq.s32.totalorder %s16, 0
      %p128 = por %p126, %p127
      %p129 = scmp.ne.s32.totalorder %s118, %s121
      %p130 = scmp.eq.s32.totalorder %s21, 1
      %p131 = por %p129, %p130
      %p132 = scmp.ne.s32.totalorder %s121, %s122
      %p133 = scmp.eq.s32.totalorder %s21, 0
      %p134 = por %p132, %p133
      %p135 = scmp.ne.s32.totalorder %s121, %s122
      %p136 = scmp.eq.s32.totalorder %s22, 1
      %p137 = por %p135, %p136
      %p139 = scmp.ne.s32.totalorder %s122, %s138
      %p140 = scmp.eq.s32.totalorder %s22, 0
      %p141 = por %p139, %p140
      %p142 = scmp.le.s32.totalorder 1, %s16
      %p143 = scmp.lt.s32.totalorder %s16, 3
      %p144 = pnand %p142, %p143
      %p145 = pneg %p144
      // Predicated region
      $region9: #{tpu_custom_call.1} parent=5 // pred_check
        _
      $region10: #{tpu_custom_call.1} parent=5 // pred_check_branch
        %147 = sbr.rel (%p144) target = $region12
      $region11: #{tpu_custom_call.1} parent=5 // pred_region
        %s148 = ssub.s32 %s16, 1
        // Predicated region
        $region13: #{tpu_custom_call.1} parent=11 // pred_check
          %p149 = pneg %p80
        $region14: #{tpu_custom_call.1} parent=11 // pred_check_branch
          %151 = sbr.rel (%p149) target = $region16
        $region15: #{tpu_custom_call.1} parent=11 // pred_region
          %s153 = ssub.s32 256, 256
          %154 = vsyncadd [#allocation6], %s153
          %s155 = smul.addr %s26, 64
          %s156 = scalar_lea.hbm %s1, %s155
          %s157 = sshll.u32 [#allocation5], 4
          %s158 = int_to_ptr.vmem [resolvable:$true] %s157
          %163 = dma.hbm_to_vmem [thread:$0]  %s156, 256, %s158, [#allocation6], 64, 64, 4
        $region16: #{tpu_custom_call.1} parent=11 // pred_fallthru
          _
        // Predicated region
        $region17: #{tpu_custom_call.1} parent=11 // pred_check
          %p164 = pneg %p106
        $region18: #{tpu_custom_call.1} parent=11 // pred_check_branch
          %166 = sbr.rel (%p164) target = $region20
        $region19: #{tpu_custom_call.1} parent=11 // pred_region
          %p167 = scmp.lt.s32.totalorder %s26, 0
          %s168 = scalar_select %p167, %s26, 0
          %s169 = scalar_lea.vmem %s2, %s168
        $region20: #{tpu_custom_call.1} parent=11 // pred_fallthru
          _
      $region12: #{tpu_custom_call.1} parent=5 // pred_fallthru
        _
      %p170 = scmp.lt.s32.totalorder %s16, 2
      // Predicated region
      $region21: #{tpu_custom_call.1} parent=5 // pred_check
        %p171 = pneg %p170
      $region22: #{tpu_custom_call.1} parent=5 // pred_check_branch
        %173 = sbr.rel (%p171) target = $region24
      $region23: #{tpu_custom_call.1} parent=5 // pred_region
        // Predicated region
        $region25: #{tpu_custom_call.1} parent=23 // pred_check
          %p174 = pneg %p48
        $region26: #{tpu_custom_call.1} parent=23 // pred_check_branch
          %176 = sbr.rel (%p174) target = $region28
        $region27: #{tpu_custom_call.1} parent=23 // pred_region
          %s177 = sand.u32 %s38, 1
          %s178 = scalar_lea.sflag [#allocation3], %s177
          %s179 = sand.u32 %s38, 1
          %s180 = smul.addr %s179, 4
          %s181 = scalar_lea.vmem [#allocation2], %s180
          %s183 = ssub.s32 64, 64
          %184 = vsyncadd %s178, %s183
          %s185 = smul.addr %s23, 64
          %s186 = scalar_lea.hbm %s0, %s185
          %s188 = sshll.u32 %s181, 4
          %s189 = int_to_ptr.vmem [resolvable:$true] %s188
          %191 = dma.hbm_to_vmem [thread:$0]  %s186, 64, %s189, %s178
        $region28: #{tpu_custom_call.1} parent=23 // pred_fallthru
          _
      $region24: #{tpu_custom_call.1} parent=5 // pred_fallthru
        _
      %p192 = scmp.le.s32.totalorder 1, %s16
      %p193 = scmp.lt.s32.totalorder %s16, 3
      %p194 = pnand %p192, %p193
      %p195 = pneg %p194
      // Predicated region
      $region29: #{tpu_custom_call.1} parent=5 // pred_check
        _
      $region30: #{tpu_custom_call.1} parent=5 // pred_check_branch
        %197 = sbr.rel (%p194) target = $region32
      $region31: #{tpu_custom_call.1} parent=5 // pred_region
        %s198 = ssub.s32 %s16, 1
        %s199 = sand.u32 %s41, 1
        %s200 = scalar_lea.sflag [#allocation3], %s199
        %s201 = sand.u32 %s41, 1
        %s202 = smul.addr %s201, 4
        %s203 = scalar_lea.vmem [#allocation2], %s202
        // Predicated region
        $region33: #{tpu_custom_call.1} parent=31 // pred_check
          %p204 = pneg %p54
        $region34: #{tpu_custom_call.1} parent=31 // pred_check_branch
          %206 = sbr.rel (%p204) target = $region36
        $region35: #{tpu_custom_call.1} parent=31 // pred_region
          %207 = dma.done %s200, 64
        $region36: #{tpu_custom_call.1} parent=31 // pred_fallthru
          _
        // Predicated region
        $region37: #{tpu_custom_call.1} parent=31 // pred_check
          %p208 = pneg %p80
        $region38: #{tpu_custom_call.1} parent=31 // pred_check_branch
          %210 = sbr.rel (%p208) target = $region40
        $region39: #{tpu_custom_call.1} parent=31 // pred_region
          %211 = dma.done [#allocation6], 256
        $region40: #{tpu_custom_call.1} parent=31 // pred_fallthru
          _
        %s212 = sand.u32 %s41, 1
        %s213 = scalar_lea.sflag [#allocation3], %s212
        %s214 = sand.u32 %s41, 1
        %s215 = smul.addr %s214, 4
        %s216 = scalar_lea.vmem [#allocation2], %s215
        %p217 = pneg %p54
        %p218 = pneg %p51
        %p219 = pneg %p80
        %p220 = pneg %p77
        %p221 = scmp.lt.s32.totalorder %s26, 0
        %s222 = scalar_select %p221, %s26, 0
        %s223 = scalar_lea.vmem %s2, %s222
        %p224 = pneg %p106
        %p225 = pneg %p103
        %p226 = pneg %p134
        %p227 = pneg %p131
        %s228 = sand.u32 %s121, 1
        %s229 = scalar_lea.sflag [#allocation4], %s228
        %s230 = sand.u32 %s121, 1
        %s231 = smul.addr %s230, 4
        %s232 = scalar_lea.vmem [#allocation7], %s231
        %p233 = scmp.lt.s32.totalorder %s26, 0
        %s234 = scalar_select %p233, %s26, 0
        %s235 = scalar_lea.vmem %s2, %s234
        %v237 = vld [vmem:[%s203] sm:$0xf]
        %v238 = vld [vmem:[#allocation5] sm:$0xf]
        %v239 = vld [vmem:[#allocation5 + $0x4] sm:$0xf]
        %v240 = vld [vmem:[#allocation5 + $0x8] sm:$0xf]
        %v241 = vld [vmem:[#allocation5 + $0xc] sm:$0xf]
        %v242 = vld [vmem:[%s235] sm:$0x1]
        %v244 = vlaneseq
        %v245 = vshrl.u32 %v244, 7
        %v246 = vsub.s32 0, %v245
        %v247 = vrot.slane %v242, %v246
        %v253 = vunpack.c.l.b16 %v238
        %v254 = vunpack.c.l.b16 %v239
        %v255 = vunpack.c.l.b16 %v240
        %v256 = vunpack.c.l.b16 %v241
        %v257 = vpack.c.b16 %v254, %v253
        %v258 = vpack.c.b16 %v256, %v255
        %vm261 = vcmask 261120
        %v263 = vsel %vm261, %v237, 0
        %265 = vmatprep.subr.bf16.mxu0 0
        %266 = vmatpush1.bf16.msra.mxu0 %v257
        %267 = vmatprep.subr.bf16.mxu0 0
        %268 = vmatpush1.bf16.msra.mxu0 %v258
        %269 = vmatprep.subr.bf16.mxu0 0
        %270 = vmatpush1.bf16.msra.mxu0 0
        %271 = vmatprep.subr.bf16.mxu0 0
        %272 = vmatpush1.bf16.msra.mxu0 0
        %273 = vmatprep.subr.bf16.mxu0 0
        %274 = vmatpush1.bf16.msra.mxu0 0
        %275 = vmatprep.subr.bf16.mxu0 0
        %276 = vmatpush1.bf16.msra.mxu0 0
        %277 = vmatprep.subr.bf16.mxu0 0
        %278 = vmatpush1.bf16.msra.mxu0 0
        %279 = vmatprep.subr.bf16.mxu0 0
        %280 = vmatpush1.bf16.msra.mxu0 0
        %281 = vmatprep.subr.bf16.mxu0 0
        %282 = vmatpush1.bf16.msra.mxu0 0
        %283 = vmatprep.subr.bf16.mxu0 0
        %284 = vmatpush1.bf16.msra.mxu0 0
        %285 = vmatprep.subr.bf16.mxu0 0
        %286 = vmatpush1.bf16.msra.mxu0 0
        %287 = vmatprep.subr.bf16.mxu0 0
        %288 = vmatpush1.bf16.msra.mxu0 0
        %289 = vmatprep.subr.bf16.mxu0 0
        %290 = vmatpush1.bf16.msra.mxu0 0
        %291 = vmatprep.subr.bf16.mxu0 0
        %292 = vmatpush1.bf16.msra.mxu0 0
        %293 = vmatprep.subr.bf16.mxu0 0
        %294 = vmatpush1.bf16.msra.mxu0 0
        %295 = vmatprep.subr.bf16.mxu0 0
        %296 = vmatpush1.bf16.msra.mxu0 0
        %297 = vmatprep.mubr.bf16.mxu0 0
        %298 = vmatmul.mubr.bf16.gmra.mrb[0].mxu0 %v263
        %v299 = vpop.f32.mrb[0].mxu0
        %v300 = vadd.f32 %v247, %v299
        %v301 = vpop.f32.mrb[0].mxu0
        %v302 = vpop.f32.mrb[0].mxu0
        %v303 = vpop.f32.mrb[0].mxu0
        %304 = vdwg.mxu0
        %v305 = vpack.c.bf16 %v300, %v300
        %307 = vrot.lane.b32.xlu0 %v305, 96
        %v308 = vpop.permute.xlu0 %307
        %vm309 = vcmask 64512
        %v311 = vsel %vm309, %v305, 0
        %v314 = vsel %vm309, %v308, 0
        %316 = vmatprep.subr.bf16.mxu0 0
        %317 = vmatpush1.bf16.xpose.msra.mxu0 %v314
        %318 = vmatprep.subr.bf16.mxu0 0
        %319 = vmatpush1.bf16.xpose.msra.mxu0 0
        %320 = vmatprep.subr.bf16.mxu0 0
        %321 = vmatpush1.bf16.xpose.msra.mxu0 0
        %322 = vmatprep.subr.bf16.mxu0 0
        %323 = vmatpush1.bf16.xpose.msra.mxu0 0
        %324 = vmatprep.subr.bf16.mxu0 0
        %325 = vmatpush1.bf16.xpose.msra.mxu0 0
        %326 = vmatprep.subr.bf16.mxu0 0
        %327 = vmatpush1.bf16.xpose.msra.mxu0 0
        %328 = vmatprep.subr.bf16.mxu0 0
        %329 = vmatpush1.bf16.xpose.msra.mxu0 0
        %330 = vmatprep.subr.bf16.mxu0 0
        %331 = vmatpush1.bf16.xpose.msra.mxu0 0
        %332 = vmatprep.subr.bf16.mxu0 0
        %333 = vmatpush1.bf16.xpose.msra.mxu0 0
        %334 = vmatprep.subr.bf16.mxu0 0
        %335 = vmatpush1.bf16.xpose.msra.mxu0 0
        %336 = vmatprep.subr.bf16.mxu0 0
        %337 = vmatpush1.bf16.xpose.msra.mxu0 0
        %338 = vmatprep.subr.bf16.mxu0 0
        %339 = vmatpush1.bf16.xpose.msra.mxu0 0
        %340 = vmatprep.subr.bf16.mxu0 0
        %341 = vmatpush1.bf16.xpose.msra.mxu0 0
        %342 = vmatprep.subr.bf16.mxu0 0
        %343 = vmatpush1.bf16.xpose.msra.mxu0 0
        %344 = vmatprep.subr.bf16.mxu0 0
        %345 = vmatpush1.bf16.xpose.msra.mxu0 0
        %346 = vmatprep.subr.bf16.mxu0 0
        %347 = vmatpush1.bf16.xpose.msra.mxu0 0
        %348 = vmatprep.mubr.bf16.mxu0 0
        %349 = vmatmul.mubr.bf16.gmra.mrb[0].mxu0 %v311
        %v350 = vpop.f32.mrb[0].mxu0
        %v351 = vadd.f32 0.0, %v350
        %v352 = vpop.f32.mrb[0].mxu0
        %v353 = vpop.f32.mrb[0].mxu0
        %v354 = vpop.f32.mrb[0].mxu0
        %355 = vdwg.mxu0
        %v356 = vsel %vm309, %v351, -inf
        %v357 = vrot.slane %v356, 4
        %v358 = vmax.f32 %v356, %v357
        %v359 = vrot.slane %v358, 2
        %v360 = vmax.f32 %v358, %v359
        %v361 = vrot.slane %v360, 1
        %v362 = vmax.f32 %v360, %v361
        %v363 = vsub.f32 %v351, %v362
        %v364 = vmul.f32 %v363, 1.442695
        %v365 = vpow.pop %v364
        %v366 = vsel %vm309, %v365, 0.0
        %v367 = vrot.slane %v366, 4
        %v368 = vadd.f32 %v366, %v367
        %v369 = vrot.slane %v368, 2
        %v370 = vadd.f32 %v368, %v369
        %v371 = vrot.slane %v370, 1
        %v372 = vadd.f32 %v370, %v371
        %v373 = vrcp.pop %v372
        %v374 = vmul.f32 %v365, %v373
        %v375 = vpack.c.bf16 %v374, %v374
        %376 = vrot.lane.b32.xlu0 %v305, 64
        %v377 = vpop.permute.xlu0 %376
        %v379 = vsel %vm309, %v375, 0
        %vm381 = vcmask 1043456
        %v383 = vsel %vm381, %v377, 0
        %385 = vmatprep.subr.bf16.mxu0 0
        %386 = vmatpush1.bf16.msra.mxu0 %v383
        %387 = vmatprep.subr.bf16.mxu0 0
        %388 = vmatpush1.bf16.msra.mxu0 0
        %389 = vmatprep.subr.bf16.mxu0 0
        %390 = vmatpush1.bf16.msra.mxu0 0
        %391 = vmatprep.subr.bf16.mxu0 0
        %392 = vmatpush1.bf16.msra.mxu0 0
        %393 = vmatprep.subr.bf16.mxu0 0
        %394 = vmatpush1.bf16.msra.mxu0 0
        %395 = vmatprep.subr.bf16.mxu0 0
        %396 = vmatpush1.bf16.msra.mxu0 0
        %397 = vmatprep.subr.bf16.mxu0 0
        %398 = vmatpush1.bf16.msra.mxu0 0
        %399 = vmatprep.subr.bf16.mxu0 0
        %400 = vmatpush1.bf16.msra.mxu0 0
        %401 = vmatprep.subr.bf16.mxu0 0
        %402 = vmatpush1.bf16.msra.mxu0 0
        %403 = vmatprep.subr.bf16.mxu0 0
        %404 = vmatpush1.bf16.msra.mxu0 0
        %405 = vmatprep.subr.bf16.mxu0 0
        %406 = vmatpush1.bf16.msra.mxu0 0
        %407 = vmatprep.subr.bf16.mxu0 0
        %408 = vmatpush1.bf16.msra.mxu0 0
        %409 = vmatprep.subr.bf16.mxu0 0
        %410 = vmatpush1.bf16.msra.mxu0 0
        %411 = vmatprep.subr.bf16.mxu0 0
        %412 = vmatpush1.bf16.msra.mxu0 0
        %413 = vmatprep.subr.bf16.mxu0 0
        %414 = vmatpush1.bf16.msra.mxu0 0
        %415 = vmatprep.subr.bf16.mxu0 0
        %416 = vmatpush1.bf16.msra.mxu0 0
        %417 = vmatprep.mubr.bf16.mxu0 0
        %418 = vmatmul.mubr.bf16.gmra.mrb[0].mxu0 %v379
        %v419 = vpop.f32.mrb[0].mxu0
        %v420 = vadd.f32 0.0, %v419
        %v421 = vpop.f32.mrb[0].mxu0
        %v422 = vpop.f32.mrb[0].mxu0
        %v423 = vpop.f32.mrb[0].mxu0
        %424 = vdwg.mxu0
        %425 = vrot.lane.b32.xlu0 %v305, 120
        %v426 = vpop.permute.xlu0 %425
        %427 = vrot.lane.b32.xlu0 %v305, 88
        %v428 = vpop.permute.xlu0 %427
        %v430 = vsel %vm309, %v426, 0
        %v433 = vsel %vm309, %v428, 0
        %435 = vmatprep.subr.bf16.mxu0 0
        %436 = vmatpush1.bf16.xpose.msra.mxu0 %v433
        %437 = vmatprep.subr.bf16.mxu0 0
        %438 = vmatpush1.bf16.xpose.msra.mxu0 0
        %439 = vmatprep.subr.bf16.mxu0 0
        %440 = vmatpush1.bf16.xpose.msra.mxu0 0
        %441 = vmatprep.subr.bf16.mxu0 0
        %442 = vmatpush1.bf16.xpose.msra.mxu0 0
        %443 = vmatprep.subr.bf16.mxu0 0
        %444 = vmatpush1.bf16.xpose.msra.mxu0 0
        %445 = vmatprep.subr.bf16.mxu0 0
        %446 = vmatpush1.bf16.xpose.msra.mxu0 0
        %447 = vmatprep.subr.bf16.mxu0 0
        %448 = vmatpush1.bf16.xpose.msra.mxu0 0
        %449 = vmatprep.subr.bf16.mxu0 0
        %450 = vmatpush1.bf16.xpose.msra.mxu0 0
        %451 = vmatprep.subr.bf16.mxu0 0
        %452 = vmatpush1.bf16.xpose.msra.mxu0 0
        %453 = vmatprep.subr.bf16.mxu0 0
        %454 = vmatpush1.bf16.xpose.msra.mxu0 0
        %455 = vmatprep.subr.bf16.mxu0 0
        %456 = vmatpush1.bf16.xpose.msra.mxu0 0
        %457 = vmatprep.subr.bf16.mxu0 0
        %458 = vmatpush1.bf16.xpose.msra.mxu0 0
        %459 = vmatprep.subr.bf16.mxu0 0
        %460 = vmatpush1.bf16.xpose.msra.mxu0 0
        %461 = vmatprep.subr.bf16.mxu0 0
        %462 = vmatpush1.bf16.xpose.msra.mxu0 0
        %463 = vmatprep.subr.bf16.mxu0 0
        %464 = vmatpush1.bf16.xpose.msra.mxu0 0
        %465 = vmatprep.subr.bf16.mxu0 0
        %466 = vmatpush1.bf16.xpose.msra.mxu0 0
        %467 = vmatprep.mubr.bf16.mxu0 0
        %468 = vmatmul.mubr.bf16.gmra.mrb[0].mxu0 %v430
        %v469 = vpop.f32.mrb[0].mxu0
        %v470 = vadd.f32 0.0, %v469
        %v471 = vpop.f32.mrb[0].mxu0
        %v472 = vpop.f32.mrb[0].mxu0
        %v473 = vpop.f32.mrb[0].mxu0
        %474 = vdwg.mxu0
        %v475 = vsel %vm309, %v470, -inf
        %v476 = vrot.slane %v475, 4
        %v477 = vmax.f32 %v475, %v476
        %v478 = vrot.slane %v477, 2
        %v479 = vmax.f32 %v477, %v478
        %v480 = vrot.slane %v479, 1
        %v481 = vmax.f32 %v479, %v480
        %v482 = vsub.f32 %v470, %v481
        %v483 = vmul.f32 %v482, 1.442695
        %v484 = vpow.pop %v483
        %v485 = vsel %vm309, %v484, 0.0
        %v486 = vrot.slane %v485, 4
        %v487 = vadd.f32 %v485, %v486
        %v488 = vrot.slane %v487, 2
        %v489 = vadd.f32 %v487, %v488
        %v490 = vrot.slane %v489, 1
        %v491 = vadd.f32 %v489, %v490
        %v492 = vrcp.pop %v491
        %v493 = vmul.f32 %v484, %v492
        %v494 = vpack.c.bf16 %v493, %v493
        %495 = vrot.lane.b32.xlu0 %v305, 56
        %v496 = vpop.permute.xlu0 %495
        %v498 = vsel %vm309, %v494, 0
        %v501 = vsel %vm381, %v496, 0
        %503 = vmatprep.subr.bf16.mxu0 0
        %504 = vmatpush1.bf16.msra.mxu0 %v501
        %505 = vmatprep.subr.bf16.mxu0 0
        %506 = vmatpush1.bf16.msra.mxu0 0
        %507 = vmatprep.subr.bf16.mxu0 0
        %508 = vmatpush1.bf16.msra.mxu0 0
        %509 = vmatprep.subr.bf16.mxu0 0
        %510 = vmatpush1.bf16.msra.mxu0 0
        %511 = vmatprep.subr.bf16.mxu0 0
        %512 = vmatpush1.bf16.msra.mxu0 0
        %513 = vmatprep.subr.bf16.mxu0 0
        %514 = vmatpush1.bf16.msra.mxu0 0
        %515 = vmatprep.subr.bf16.mxu0 0
        %516 = vmatpush1.bf16.msra.mxu0 0
        %517 = vmatprep.subr.bf16.mxu0 0
        %518 = vmatpush1.bf16.msra.mxu0 0
        %519 = vmatprep.subr.bf16.mxu0 0
        %520 = vmatpush1.bf16.msra.mxu0 0
        %521 = vmatprep.subr.bf16.mxu0 0
        %522 = vmatpush1.bf16.msra.mxu0 0
        %523 = vmatprep.subr.bf16.mxu0 0
        %524 = vmatpush1.bf16.msra.mxu0 0
        %525 = vmatprep.subr.bf16.mxu0 0
        %526 = vmatpush1.bf16.msra.mxu0 0
        %527 = vmatprep.subr.bf16.mxu0 0
        %528 = vmatpush1.bf16.msra.mxu0 0
        %529 = vmatprep.subr.bf16.mxu0 0
        %530 = vmatpush1.bf16.msra.mxu0 0
        %531 = vmatprep.subr.bf16.mxu0 0
        %532 = vmatpush1.bf16.msra.mxu0 0
        %533 = vmatprep.subr.bf16.mxu0 0
        %534 = vmatpush1.bf16.msra.mxu0 0
        %535 = vmatprep.mubr.bf16.mxu0 0
        %536 = vmatmul.mubr.bf16.gmra.mrb[0].mxu0 %v498
        %v537 = vpop.f32.mrb[0].mxu0
        %v538 = vadd.f32 0.0, %v537
        %v539 = vpop.f32.mrb[0].mxu0
        %v540 = vpop.f32.mrb[0].mxu0
        %v541 = vpop.f32.mrb[0].mxu0
        %542 = vdwg.mxu0
        %543 = vrot.lane.b32.xlu0 %v305, 112
        %v544 = vpop.permute.xlu0 %543
        %545 = vrot.lane.b32.xlu0 %v305, 80
        %v546 = vpop.permute.xlu0 %545
        %v548 = vsel %vm309, %v544, 0
        %v551 = vsel %vm309, %v546, 0
        %553 = vmatprep.subr.bf16.mxu0 0
        %554 = vmatpush1.bf16.xpose.msra.mxu0 %v551
        %555 = vmatprep.subr.bf16.mxu0 0
        %556 = vmatpush1.bf16.xpose.msra.mxu0 0
        %557 = vmatprep.subr.bf16.mxu0 0
        %558 = vmatpush1.bf16.xpose.msra.mxu0 0
        %559 = vmatprep.subr.bf16.mxu0 0
        %560 = vmatpush1.bf16.xpose.msra.mxu0 0
        %561 = vmatprep.subr.bf16.mxu0 0
        %562 = vmatpush1.bf16.xpose.msra.mxu0 0
        %563 = vmatprep.subr.bf16.mxu0 0
        %564 = vmatpush1.bf16.xpose.msra.mxu0 0
        %565 = vmatprep.subr.bf16.mxu0 0
        %566 = vmatpush1.bf16.xpose.msra.mxu0 0
        %567 = vmatprep.subr.bf16.mxu0 0
        %568 = vmatpush1.bf16.xpose.msra.mxu0 0
        %569 = vmatprep.subr.bf16.mxu0 0
        %570 = vmatpush1.bf16.xpose.msra.mxu0 0
        %571 = vmatprep.subr.bf16.mxu0 0
        %572 = vmatpush1.bf16.xpose.msra.mxu0 0
        %573 = vmatprep.subr.bf16.mxu0 0
        %574 = vmatpush1.bf16.xpose.msra.mxu0 0
        %575 = vmatprep.subr.bf16.mxu0 0
        %576 = vmatpush1.bf16.xpose.msra.mxu0 0
        %577 = vmatprep.subr.bf16.mxu0 0
        %578 = vmatpush1.bf16.xpose.msra.mxu0 0
        %579 = vmatprep.subr.bf16.mxu0 0
        %580 = vmatpush1.bf16.xpose.msra.mxu0 0
        %581 = vmatprep.subr.bf16.mxu0 0
        %582 = vmatpush1.bf16.xpose.msra.mxu0 0
        %583 = vmatprep.subr.bf16.mxu0 0
        %584 = vmatpush1.bf16.xpose.msra.mxu0 0
        %585 = vmatprep.mubr.bf16.mxu0 0
        %586 = vmatmul.mubr.bf16.gmra.mrb[0].mxu0 %v548
        %v587 = vpop.f32.mrb[0].mxu0
        %v588 = vadd.f32 0.0, %v587
        %v589 = vpop.f32.mrb[0].mxu0
        %v590 = vpop.f32.mrb[0].mxu0
        %v591 = vpop.f32.mrb[0].mxu0
        %592 = vdwg.mxu0
        %v593 = vsel %vm309, %v588, -inf
        %v594 = vrot.slane %v593, 4
        %v595 = vmax.f32 %v593, %v594
        %v596 = vrot.slane %v595, 2
        %v597 = vmax.f32 %v595, %v596
        %v598 = vrot.slane %v597, 1
        %v599 = vmax.f32 %v597, %v598
        %v600 = vsub.f32 %v588, %v599
        %v601 = vmul.f32 %v600, 1.442695
        %v602 = vpow.pop %v601
        %v603 = vsel %vm309, %v602, 0.0
        %v604 = vrot.slane %v603, 4
        %v605 = vadd.f32 %v603, %v604
        %v606 = vrot.slane %v605, 2
        %v607 = vadd.f32 %v605, %v606
        %v608 = vrot.slane %v607, 1
        %v609 = vadd.f32 %v607, %v608
        %v610 = vrcp.pop %v609
        %v611 = vmul.f32 %v602, %v610
        %v612 = vpack.c.bf16 %v611, %v611
        %613 = vrot.lane.b32.xlu0 %v305, 48
        %v614 = vpop.permute.xlu0 %613
        %v616 = vsel %vm309, %v612, 0
        %v619 = vsel %vm381, %v614, 0
        %621 = vmatprep.subr.bf16.mxu0 0
        %622 = vmatpush1.bf16.msra.mxu0 %v619
        %623 = vmatprep.subr.bf16.mxu0 0
        %624 = vmatpush1.bf16.msra.mxu0 0
        %625 = vmatprep.subr.bf16.mxu0 0
        %626 = vmatpush1.bf16.msra.mxu0 0
        %627 = vmatprep.subr.bf16.mxu0 0
        %628 = vmatpush1.bf16.msra.mxu0 0
        %629 = vmatprep.subr.bf16.mxu0 0
        %630 = vmatpush1.bf16.msra.mxu0 0
        %631 = vmatprep.subr.bf16.mxu0 0
        %632 = vmatpush1.bf16.msra.mxu0 0
        %633 = vmatprep.subr.bf16.mxu0 0
        %634 = vmatpush1.bf16.msra.mxu0 0
        %635 = vmatprep.subr.bf16.mxu0 0
        %636 = vmatpush1.bf16.msra.mxu0 0
        %637 = vmatprep.subr.bf16.mxu0 0
        %638 = vmatpush1.bf16.msra.mxu0 0
        %639 = vmatprep.subr.bf16.mxu0 0
        %640 = vmatpush1.bf16.msra.mxu0 0
        %641 = vmatprep.subr.bf16.mxu0 0
        %642 = vmatpush1.bf16.msra.mxu0 0
        %643 = vmatprep.subr.bf16.mxu0 0
        %644 = vmatpush1.bf16.msra.mxu0 0
        %645 = vmatprep.subr.bf16.mxu0 0
        %646 = vmatpush1.bf16.msra.mxu0 0
        %647 = vmatprep.subr.bf16.mxu0 0
        %648 = vmatpush1.bf16.msra.mxu0 0
        %649 = vmatprep.subr.bf16.mxu0 0
        %650 = vmatpush1.bf16.msra.mxu0 0
        %651 = vmatprep.subr.bf16.mxu0 0
        %652 = vmatpush1.bf16.msra.mxu0 0
        %653 = vmatprep.mubr.bf16.mxu0 0
        %654 = vmatmul.mubr.bf16.gmra.mrb[0].mxu0 %v616
        %v655 = vpop.f32.mrb[0].mxu0
        %v656 = vadd.f32 0.0, %v655
        %v657 = vpop.f32.mrb[0].mxu0
        %v658 = vpop.f32.mrb[0].mxu0
        %v659 = vpop.f32.mrb[0].mxu0
        %660 = vdwg.mxu0
        %661 = vrot.lane.b32.xlu0 %v305, 104
        %v662 = vpop.permute.xlu0 %661
        %663 = vrot.lane.b32.xlu0 %v305, 72
        %v664 = vpop.permute.xlu0 %663
        %v666 = vsel %vm309, %v662, 0
        %v669 = vsel %vm309, %v664, 0
        %671 = vmatprep.subr.bf16.mxu0 0
        %672 = vmatpush1.bf16.xpose.msra.mxu0 %v669
        %673 = vmatprep.subr.bf16.mxu0 0
        %674 = vmatpush1.bf16.xpose.msra.mxu0 0
        %675 = vmatprep.subr.bf16.mxu0 0
        %676 = vmatpush1.bf16.xpose.msra.mxu0 0
        %677 = vmatprep.subr.bf16.mxu0 0
        %678 = vmatpush1.bf16.xpose.msra.mxu0 0
        %679 = vmatprep.subr.bf16.mxu0 0
        %680 = vmatpush1.bf16.xpose.msra.mxu0 0
        %681 = vmatprep.subr.bf16.mxu0 0
        %682 = vmatpush1.bf16.xpose.msra.mxu0 0
        %683 = vmatprep.subr.bf16.mxu0 0
        %684 = vmatpush1.bf16.xpose.msra.mxu0 0
        %685 = vmatprep.subr.bf16.mxu0 0
        %686 = vmatpush1.bf16.xpose.msra.mxu0 0
        %687 = vmatprep.subr.bf16.mxu0 0
        %688 = vmatpush1.bf16.xpose.msra.mxu0 0
        %689 = vmatprep.subr.bf16.mxu0 0
        %690 = vmatpush1.bf16.xpose.msra.mxu0 0
        %691 = vmatprep.subr.bf16.mxu0 0
        %692 = vmatpush1.bf16.xpose.msra.mxu0 0
        %693 = vmatprep.subr.bf16.mxu0 0
        %694 = vmatpush1.bf16.xpose.msra.mxu0 0
        %695 = vmatprep.subr.bf16.mxu0 0
        %696 = vmatpush1.bf16.xpose.msra.mxu0 0
        %697 = vmatprep.subr.bf16.mxu0 0
        %698 = vmatpush1.bf16.xpose.msra.mxu0 0
        %699 = vmatprep.subr.bf16.mxu0 0
        %700 = vmatpush1.bf16.xpose.msra.mxu0 0
        %701 = vmatprep.subr.bf16.mxu0 0
        %702 = vmatpush1.bf16.xpose.msra.mxu0 0
        %703 = vmatprep.mubr.bf16.mxu0 0
        %704 = vmatmul.mubr.bf16.gmra.mrb[0].mxu0 %v666
        %v705 = vpop.f32.mrb[0].mxu0
        %v706 = vadd.f32 0.0, %v705
        %v707 = vpop.f32.mrb[0].mxu0
        %v708 = vpop.f32.mrb[0].mxu0
        %v709 = vpop.f32.mrb[0].mxu0
        %710 = vdwg.mxu0
        %v711 = vsel %vm309, %v706, -inf
        %v712 = vrot.slane %v711, 4
        %v713 = vmax.f32 %v711, %v712
        %v714 = vrot.slane %v713, 2
        %v715 = vmax.f32 %v713, %v714
        %v716 = vrot.slane %v715, 1
        %v717 = vmax.f32 %v715, %v716
        %v718 = vsub.f32 %v706, %v717
        %v719 = vmul.f32 %v718, 1.442695
        %v720 = vpow.pop %v719
        %v721 = vsel %vm309, %v720, 0.0
        %v722 = vrot.slane %v721, 4
        %v723 = vadd.f32 %v721, %v722
        %v724 = vrot.slane %v723, 2
        %v725 = vadd.f32 %v723, %v724
        %v726 = vrot.slane %v725, 1
        %v727 = vadd.f32 %v725, %v726
        %v728 = vrcp.pop %v727
        %v729 = vmul.f32 %v720, %v728
        %v730 = vpack.c.bf16 %v729, %v729
        %731 = vrot.lane.b32.xlu0 %v305, 40
        %v732 = vpop.permute.xlu0 %731
        %v734 = vsel %vm309, %v730, 0
        %v737 = vsel %vm381, %v732, 0
        %739 = vmatprep.subr.bf16.mxu0 0
        %740 = vmatpush1.bf16.msra.mxu0 %v737
        %741 = vmatprep.subr.bf16.mxu0 0
        %742 = vmatpush1.bf16.msra.mxu0 0
        %743 = vmatprep.subr.bf16.mxu0 0
        %744 = vmatpush1.bf16.msra.mxu0 0
        %745 = vmatprep.subr.bf16.mxu0 0
        %746 = vmatpush1.bf16.msra.mxu0 0
        %747 = vmatprep.subr.bf16.mxu0 0
        %748 = vmatpush1.bf16.msra.mxu0 0
        %749 = vmatprep.subr.bf16.mxu0 0
        %750 = vmatpush1.bf16.msra.mxu0 0
        %751 = vmatprep.subr.bf16.mxu0 0
        %752 = vmatpush1.bf16.msra.mxu0 0
        %753 = vmatprep.subr.bf16.mxu0 0
        %754 = vmatpush1.bf16.msra.mxu0 0
        %755 = vmatprep.subr.bf16.mxu0 0
        %756 = vmatpush1.bf16.msra.mxu0 0
        %757 = vmatprep.subr.bf16.mxu0 0
        %758 = vmatpush1.bf16.msra.mxu0 0
        %759 = vmatprep.subr.bf16.mxu0 0
        %760 = vmatpush1.bf16.msra.mxu0 0
        %761 = vmatprep.subr.bf16.mxu0 0
        %762 = vmatpush1.bf16.msra.mxu0 0
        %763 = vmatprep.subr.bf16.mxu0 0
        %764 = vmatpush1.bf16.msra.mxu0 0
        %765 = vmatprep.subr.bf16.mxu0 0
        %766 = vmatpush1.bf16.msra.mxu0 0
        %767 = vmatprep.subr.bf16.mxu0 0
        %768 = vmatpush1.bf16.msra.mxu0 0
        %769 = vmatprep.subr.bf16.mxu0 0
        %770 = vmatpush1.bf16.msra.mxu0 0
        %771 = vmatprep.mubr.bf16.mxu0 0
        %772 = vmatmul.mubr.bf16.gmra.mrb[0].mxu0 %v734
        %v773 = vpop.f32.mrb[0].mxu0
        %v774 = vadd.f32 0.0, %v773
        %v775 = vpop.f32.mrb[0].mxu0
        %v776 = vpop.f32.mrb[0].mxu0
        %v777 = vpop.f32.mrb[0].mxu0
        %778 = vdwg.mxu0
        %780 = vrot.lane.b32.xlu0 %v538, 8
        %v781 = vpop.permute.xlu0 %780
        %784 = vrot.lane.b32.xlu0 %v656, 16
        %v785 = vpop.permute.xlu0 %784
        %788 = vrot.lane.b32.xlu0 %v774, 24
        %v789 = vpop.permute.xlu0 %788
        %v791 = vsel %vm309, %v420, %v781
        %vm792 = vcmask 130048
        %v793 = vsel %vm792, %v791, %v785
        %vm794 = vcmask 195584
        %v795 = vsel %vm794, %v793, %v789
        %v796 = vpack.c.bf16 %v795, %v795
        %vm797 = vcmask 257024
        %798 = vst.msk [vmem:[%s232] sm:$0xf] %vm797, %v796
        %s799 = sand.u32 %s121, 1
        %s800 = scalar_lea.sflag [#allocation4], %s799
        %s801 = sand.u32 %s121, 1
        %s802 = smul.addr %s801, 4
        %s803 = scalar_lea.vmem [#allocation7], %s802
        // Predicated region
        $region41: #{tpu_custom_call.1} parent=31 // pred_check
          %p804 = pneg %p131
        $region42: #{tpu_custom_call.1} parent=31 // pred_check_branch
          %806 = sbr.rel (%p804) target = $region44
        $region43: #{tpu_custom_call.1} parent=31 // pred_region
          %s808 = ssub.s32 64, 64
          %809 = vsyncadd %s800, %s808
          %s810 = sadd.s32 %s26, %s25
          %s811 = smul.addr %s810, 64
          %s812 = scalar_lea.hbm %s3, %s811
          %s814 = sshll.u32 %s803, 4
          %s815 = int_to_ptr.vmem [resolvable:$true] %s814
          %817 = dma.vmem_to_hbm [thread:$0]  %s815, 64, %s812, %s800
        $region44: #{tpu_custom_call.1} parent=31 // pred_fallthru
          _
      $region32: #{tpu_custom_call.1} parent=5 // pred_fallthru
        _
      %p818 = scmp.le.s32.totalorder 2, %s16
      // Predicated region
      $region45: #{tpu_custom_call.1} parent=5 // pred_check
        %p819 = pneg %p818
      $region46: #{tpu_custom_call.1} parent=5 // pred_check_branch
        %821 = sbr.rel (%p819) target = $region48
      $region47: #{tpu_custom_call.1} parent=5 // pred_region
        %s822 = ssub.s32 %s16, 2
        // Predicated region
        $region49: #{tpu_custom_call.1} parent=47 // pred_check
          %p823 = pneg %p137
        $region50: #{tpu_custom_call.1} parent=47 // pred_check_branch
          %825 = sbr.rel (%p823) target = $region52
        $region51: #{tpu_custom_call.1} parent=47 // pred_region
          %s826 = sand.u32 %s122, 1
          %s827 = scalar_lea.sflag [#allocation4], %s826
          %s828 = sand.u32 %s122, 1
          %s829 = smul.addr %s828, 4
          %s830 = scalar_lea.vmem [#allocation7], %s829
          %831 = dma.done %s827, 64
        $region52: #{tpu_custom_call.1} parent=47 // pred_fallthru
          _
      $region48: #{tpu_custom_call.1} parent=5 // pred_fallthru
        _
    $region6: #{tpu_custom_call.1} parent=1 // loop_footer
      %s20 = sadd.s32 1, %s16
    $region7: #{tpu_custom_call.1} parent=1 // loop_footer_branch
      %15 = sbr.rel target = $region3
    $region8: #{tpu_custom_call.1} parent=1 // loop_exit
      _
    %832 = vsyncpa [#allocation3], 1
    %s833 = scalar_lea.sflag [#allocation3], 1
    %834 = vsyncpa %s833, 1
    %835 = vsyncpa [#allocation6], 1
    %836 = vsyncpa [#allocation4], 1
    %s837 = scalar_lea.sflag [#allocation4], 1
    %838 = vsyncpa %s837, 1

</llo_original>
